<compile_context>
chip_gen: v7x
topology: tpu7x:2x2x1
jax: 0.10.0
libtpu: 0.0.40
codegen_flags: <defaults>
</compile_context>

<pallas_src>
import jax
import jax.numpy as jnp
from jax.experimental import pallas as pl
from jax.experimental.pallas import tpu as pltpu

HIDDEN = 256  # fixed by the module definition: nn.Linear(in_features, 256)


def _round_up(n, m):
    return ((n + m - 1) // m) * m


def _attention_kernel(x_ref, w1_ref, b1_ref, w2_ref, b2_ref, o_ref):
    x = x_ref[...].astype(jnp.float32)                                   # (TB, F)

    # Linear(F, 256) + ReLU  ->  MXU matmul; 256-wide result is lane-dense.
    s = jnp.dot(x, w1_ref[...], preferred_element_type=jnp.float32)      # (TB, 256)
    s = jnp.maximum(s + b1_ref[...], 0.0)

    # Linear(256, 1): VPU multiply + cross-lane (XLU) reduction instead of an
    # N=1 MXU matmul (which would fill 1/256 of the MXU output lanes).
    logit = jnp.sum(s * w2_ref[...], axis=-1, keepdims=True) + b2_ref[0]  # (TB, 1)

    w = jax.nn.sigmoid(logit)                                            # (TB, 1)
    o_ref[...] = (x * w).astype(o_ref.dtype)                             # (TB, F)


def attention_forward(x, params, *, block_b=None):
    """x: (B, F) float32.  params: w1 (F,256), b1 (256,), w2 (256,), b2 (1,)."""
    B, F = x.shape
    w1 = params["w1"]                         # (F, HIDDEN)
    b1 = params["b1"].reshape(1, HIDDEN)      # lane-dense bias row
    w2 = params["w2"].reshape(1, HIDDEN)      # Linear(256,1) weight as a row
    b2 = params["b2"].reshape(1)              # scalar bias -> SMEM

    # Batch tile: tall enough to amortize per-grid-step overhead at large B,
    # small enough to leave lots of headroom under v7x's 64 MiB VMEM even with
    # double-buffered input/output tiles and the (TB, 256) f32 hidden tensor.
    if block_b is None:
        block_b = min(_round_up(B, 8), 2048)
    block_b = max(8, _round_up(block_b, 8))

    # Pad B so every grid step is a full (block_b, F) block; pad rows are
    # independent per-row work, so they don't perturb the real rows.
    B_pad = _round_up(B, block_b)
    x_p = x if B_pad == B else jnp.pad(x, ((0, B_pad - B), (0, 0)))

    grid = (B_pad // block_b,)

    out = pl.pallas_call(
        _attention_kernel,
        out_shape=jax.ShapeDtypeStruct((B_pad, F), x.dtype),
        grid_spec=pltpu.PrefetchScalarGridSpec(
            num_scalar_prefetch=0,
            grid=grid,
            in_specs=[
                pl.BlockSpec((block_b, F), lambda i: (i, 0)),        # x tile
                pl.BlockSpec((F, HIDDEN), lambda i: (0, 0)),         # w1 (resident)
                pl.BlockSpec((1, HIDDEN), lambda i: (0, 0)),         # b1 (resident)
                pl.BlockSpec((1, HIDDEN), lambda i: (0, 0)),         # w2 (resident)
                pl.BlockSpec(memory_space=pltpu.MemorySpace.SMEM),   # b2 scalar
            ],
            out_specs=pl.BlockSpec((block_b, F), lambda i: (i, 0)),
        ),
        compiler_params=pltpu.CompilerParams(
            dimension_semantics=("parallel",),   # dual-TC sharding on v7x
        ),
    )(x_p, w1, b1, w2, b2)

    return out if B_pad == B else out[:B]


def reference_forward(x, params):
    """Pure-JAX reference matching the PyTorch AttentionModule exactly."""
    s = jnp.maximum(x @ params["w1"] + params["b1"], 0.0)
    logit = s @ params["w2"][:, None] + params["b2"]                     # (B, 1)
    return x * jax.nn.sigmoid(logit)


def init_params(key, in_features):
    ks = jax.random.split(key, 4)
    s1 = 1.0 / jnp.sqrt(in_features)
    s2 = 1.0 / jnp.sqrt(HIDDEN)
    return {
        "w1": jax.random.normal(ks[0], (in_features, HIDDEN), jnp.float32) * s1,
        "b1": jax.random.normal(ks[1], (HIDDEN,), jnp.float32) * s1,
        "w2": jax.random.normal(ks[2], (HIDDEN,), jnp.float32) * s2,
        "b2": jax.random.normal(ks[3], (1,), jnp.float32) * s2,
    }


if __name__ == "__main__":
    batch = 8
    in_features = 32

    key = jax.random.PRNGKey(0)
    k_x, k_p = jax.random.split(key)
    x = jax.random.normal(k_x, (batch, in_features), jnp.float32)
    params = init_params(k_p, in_features)

    out = attention_forward(x, params)
    out = jax.block_until_ready(out)

    ref = reference_forward(x, params)
    assert out.shape == (batch, in_features)
    assert jnp.allclose(out, ref, atol=1e-4, rtol=1e-4), (
        f"max abs diff {jnp.max(jnp.abs(out - ref))}")

    # Exercise the multi-step grid path too (B not a multiple of the tile).
    b2_ = 37
    x2 = jax.random.normal(k_x, (b2_, in_features), jnp.float32)
    out2 = jax.block_until_ready(attention_forward(x2, params, block_b=16))
    ref2 = reference_forward(x2, params)
    assert out2.shape == (b2_, in_features)
    assert jnp.allclose(out2, ref2, atol=1e-4, rtol=1e-4), (
        f"max abs diff {jnp.max(jnp.abs(out2 - ref2))}")

    print("KERNEL_OK")
</pallas_src>

<mosaic_0001>
module attributes {stable_mosaic.version = 11 : i64} {
  func.func @_attention_kernel(%arg0: i32, %arg1: memref<8x32xf32, #tpu.memory_space<vmem>>, %arg2: memref<32x256xf32, #tpu.memory_space<vmem>>, %arg3: memref<1x256xf32, #tpu.memory_space<vmem>>, %arg4: memref<1x256xf32, #tpu.memory_space<vmem>>, %arg5: memref<1xf32, #tpu.memory_space<smem>>, %arg6: memref<8x32xf32, #tpu.memory_space<vmem>>) attributes {dimension_semantics = [#tpu.dimension_semantics<parallel>], iteration_bounds = array<i64: 1>, scalar_prefetch = 0 : i64, scratch_operands = 0 : i64, tpu.core_type = #tpu.core_type<tc>, window_params = [{transform_indices = @transform_0, window_bounds = array<i64: 8, 32>}, {pipeline_mode = #tpu.pipeline_mode<synchronous>, transform_indices = @transform_1, window_bounds = array<i64: 32, 256>}, {pipeline_mode = #tpu.pipeline_mode<synchronous>, transform_indices = @transform_2, window_bounds = array<i64: 1, 256>}, {pipeline_mode = #tpu.pipeline_mode<synchronous>, transform_indices = @transform_3, window_bounds = array<i64: 1, 256>}, {transform_indices = @transform_4, window_bounds = array<i64: 1>}, {transform_indices = @transform_5, window_bounds = array<i64: 8, 32>}]} {
    %c0 = arith.constant 0 : index
    %c0_0 = arith.constant 0 : index
    %0 = vector.load %arg1[%c0, %c0_0] : memref<8x32xf32, #tpu.memory_space<vmem>>, vector<8x32xf32>
    %c0_1 = arith.constant 0 : index
    %c0_2 = arith.constant 0 : index
    %1 = vector.load %arg2[%c0_1, %c0_2] : memref<32x256xf32, #tpu.memory_space<vmem>>, vector<32x256xf32>
    %cst = arith.constant dense<0.000000e+00> : vector<8x256xf32>
    %2 = tpu.matmul %0, %1, %cst {dimension_numbers = #tpu.dot_dimension_numbers<[1], [0], [0], [1], [0, 0, 1, 1], [], []>} : vector<8x32xf32>, vector<32x256xf32>, vector<8x256xf32> -> vector<8x256xf32>
    %c0_3 = arith.constant 0 : index
    %c0_4 = arith.constant 0 : index
    %3 = vector.load %arg3[%c0_3, %c0_4] : memref<1x256xf32, #tpu.memory_space<vmem>>, vector<1x256xf32>
    %4 = vector.broadcast %3 : vector<1x256xf32> to vector<8x256xf32>
    %5 = arith.addf %2, %4 : vector<8x256xf32>
    %cst_5 = arith.constant 0.000000e+00 : f32
    %6 = vector.broadcast %cst_5 : f32 to vector<8x256xf32>
    %7 = arith.maximumf %5, %6 : vector<8x256xf32>
    %c0_6 = arith.constant 0 : index
    %c0_7 = arith.constant 0 : index
    %8 = vector.load %arg4[%c0_6, %c0_7] : memref<1x256xf32, #tpu.memory_space<vmem>>, vector<1x256xf32>
    %9 = vector.broadcast %8 : vector<1x256xf32> to vector<8x256xf32>
    %10 = arith.mulf %7, %9 : vector<8x256xf32>
    %cst_8 = arith.constant dense<0.000000e+00> : vector<8xf32>
    %11 = vector.multi_reduction <add>, %10, %cst_8 [1] : vector<8x256xf32> to vector<8xf32>
    %12 = vector.shape_cast %11 : vector<8xf32> to vector<8x1xf32>
    %c0_9 = arith.constant 0 : index
    %13 = memref.load %arg5[%c0_9] : memref<1xf32, #tpu.memory_space<smem>>
    %14 = vector.broadcast %13 : f32 to vector<8x1xf32>
    %15 = arith.addf %12, %14 : vector<8x1xf32>
    %16 = arith.negf %15 : vector<8x1xf32>
    %17 = math.exp %16 : vector<8x1xf32>
    %cst_10 = arith.constant 1.000000e+00 : f32
    %18 = vector.broadcast %cst_10 : f32 to vector<8x1xf32>
    %19 = arith.addf %18, %17 : vector<8x1xf32>
    %20 = arith.divf %18, %19 : vector<8x1xf32>
    %21 = vector.broadcast %20 : vector<8x1xf32> to vector<8x32xf32>
    %22 = arith.mulf %0, %21 : vector<8x32xf32>
    %c0_11 = arith.constant 0 : index
    %c0_12 = arith.constant 0 : index
    %23 = vector.load %arg6[%c0_11, %c0_12] : memref<8x32xf32, #tpu.memory_space<vmem>>, vector<8x32xf32>
    tpu.vector_store %arg6[%c0_11, %c0_12], %22 {strides = array<i32>} : memref<8x32xf32, #tpu.memory_space<vmem>>, vector<8x32xf32>,
    return
  }
  func.func @transform_0(%arg0: i32) -> (i32, i32) {
    %c0_i32 = arith.constant 0 : i32
    %c0_i32_0 = arith.constant 0 : i32
    return %arg0, %c0_i32 : i32, i32
  }
  func.func @transform_1(%arg0: i32) -> (i32, i32) {
    %c0_i32 = arith.constant 0 : i32
    %c0_i32_0 = arith.constant 0 : i32
    %c0_i32_1 = arith.constant 0 : i32
    return %c0_i32, %c0_i32_0 : i32, i32
  }
  func.func @transform_2(%arg0: i32) -> (i32, i32) {
    %c0_i32 = arith.constant 0 : i32
    %c0_i32_0 = arith.constant 0 : i32
    %c0_i32_1 = arith.constant 0 : i32
    return %c0_i32, %c0_i32_0 : i32, i32
  }
  func.func @transform_3(%arg0: i32) -> (i32, i32) {
    %c0_i32 = arith.constant 0 : i32
    %c0_i32_0 = arith.constant 0 : i32
    %c0_i32_1 = arith.constant 0 : i32
    return %c0_i32, %c0_i32_0 : i32, i32
  }
  func.func @transform_4(%arg0: i32) -> i32 {
    %c0_i32 = arith.constant 0 : i32
    %c0_i32_0 = arith.constant 0 : i32
    return %c0_i32 : i32
  }
  func.func @transform_5(%arg0: i32) -> (i32, i32) {
    %c0_i32 = arith.constant 0 : i32
    %c0_i32_0 = arith.constant 0 : i32
    return %arg0, %c0_i32 : i32, i32
  }
}

</mosaic_0001>

<llo_original>
// kernel: tpu_custom_call.1
$region0: #{tpu_custom_call.1}
  #allocation0 [shape = 'u32[]', space=smem, size = 0x4, offset = 0x4, fixed_abs, tag = 'smem constant byte address 0x4 - core index']
  #allocation1 [shape = 'u32[144,128]{1,0:T(1,128)}', space=vmem, size = 0x12000, scoped, tag = 'internal scratch']
  #allocation2 [shape = 'f32[1]{0:T(128)S(6)}', space=smem, size = 0x200, scoped, tag = 'scoped memory for tpu_custom_call.1']
  %s0 = inlined_call_operand.hbm [shape: f32[8,32], index: 0, kind: input, shape index: {}]
  %s1 = inlined_call_operand.hbm [shape: f32[32,256], index: 1, kind: input, shape index: {}]
  %s2 = inlined_call_operand.vmem [shape: f32[1,256], index: 2, kind: input, shape index: {}]
  %s3 = inlined_call_operand.vmem [shape: f32[1,256], index: 3, kind: input, shape index: {}]
  %s4 = inlined_call_operand.<no memory space> [shape: f32[1], index: 4, kind: input, shape index: {}]
  %s5 = inlined_call_operand.hbm [shape: f32[8,32], index: 5, kind: output, shape index: {}]
  %s6 = sld [smem:[#allocation0]]
  $region38: #{tpu_custom_call.1} parent=0
    _
  %s8 = ssub.s32 1, %s6
  %s9 = scalar_select 0, %s8, %s6
  %10 = sst [smem:[#allocation2]] %s4
  $region1: #{tpu_custom_call.1} parent=0
    #allocation3 [shape = 'u8[4096]{0}', space=vmem, size = 0x1000, scoped, tag = 'input window, operand 0, single buffered']
    #allocation4 [shape = 's32[1]{0}', space=sflag, size = 0x4, scoped, tag = 'scoped memory for tpu_custom_call.1']
    #allocation5 [shape = 's32[1]{0}', space=sflag, size = 0x4, scoped, tag = 'scoped memory for tpu_custom_call.1']
    #allocation6 [shape = 'u8[32768]{0}', space=vmem, size = 0x8000, scoped, tag = 'input window, operand 1, single buffered']
    #allocation7 [shape = 's32[1]{0}', space=sflag, size = 0x4, scoped, tag = 'scoped memory for tpu_custom_call.1']
    #allocation8 [shape = 'u8[4096]{0}', space=vmem, size = 0x1000, scoped, tag = 'output window, operand 0, single buffered']
    %11 = vsyncpa [#allocation4], 0
    %12 = vsyncpa [#allocation7], 0
    %13 = vsyncpa [#allocation5], 0
    // Predicated region
    $region2: #{tpu_custom_call.1} parent=1 // pred_check
      _
    $region3: #{tpu_custom_call.1} parent=1 // pred_check_branch
      %15 = sbr.rel (0) target = $region5
    $region4: #{tpu_custom_call.1} parent=1 // pred_region
      %s17 = ssub.s32 128, 128
      %18 = vsyncadd [#allocation4], %s17
      %s20 = sshll.u32 [#allocation3], 4
      %s21 = int_to_ptr.vmem [resolvable:$true] %s20
      %23 = dma.hbm_to_vmem [thread:$0]  %s0, 128, %s21, [#allocation4]
    $region5: #{tpu_custom_call.1} parent=1 // pred_fallthru
      _
    // Predicated region
    $region6: #{tpu_custom_call.1} parent=1 // pred_check
      _
    $region7: #{tpu_custom_call.1} parent=1 // pred_check_branch
      %25 = sbr.rel (0) target = $region9
    $region8: #{tpu_custom_call.1} parent=1 // pred_region
      %s27 = ssub.s32 1024, 1024
      %28 = vsyncadd [#allocation7], %s27
      %s29 = sshll.u32 [#allocation6], 4
      %s30 = int_to_ptr.vmem [resolvable:$true] %s29
      %35 = dma.hbm_to_vmem [thread:$0]  %s1, 1024, %s30, [#allocation7], 256, 256, 16
    $region9: #{tpu_custom_call.1} parent=1 // pred_fallthru
      _
    // Predicated region
    $region10: #{tpu_custom_call.1} parent=1 // pred_check
      _
    $region11: #{tpu_custom_call.1} parent=1 // pred_check_branch
      %37 = sbr.rel (0) target = $region13
    $region12: #{tpu_custom_call.1} parent=1 // pred_region
      _
    $region13: #{tpu_custom_call.1} parent=1 // pred_fallthru
      _
    // Predicated region
    $region14: #{tpu_custom_call.1} parent=1 // pred_check
      _
    $region15: #{tpu_custom_call.1} parent=1 // pred_check_branch
      %39 = sbr.rel (0) target = $region17
    $region16: #{tpu_custom_call.1} parent=1 // pred_region
      _
    $region17: #{tpu_custom_call.1} parent=1 // pred_fallthru
      _
    // Predicated region
    $region18: #{tpu_custom_call.1} parent=1 // pred_check
      _
    $region19: #{tpu_custom_call.1} parent=1 // pred_check_branch
      %41 = sbr.rel (0) target = $region21
    $region20: #{tpu_custom_call.1} parent=1 // pred_region
      _
    $region21: #{tpu_custom_call.1} parent=1 // pred_fallthru
      _
    // Predicated region
    $region22: #{tpu_custom_call.1} parent=1 // pred_check
      _
    $region23: #{tpu_custom_call.1} parent=1 // pred_check_branch
      %43 = sbr.rel (0) target = $region25
    $region24: #{tpu_custom_call.1} parent=1 // pred_region
      %44 = dma.done [#allocation4], 128
    $region25: #{tpu_custom_call.1} parent=1 // pred_fallthru
      _
    // Predicated region
    $region26: #{tpu_custom_call.1} parent=1 // pred_check
      _
    $region27: #{tpu_custom_call.1} parent=1 // pred_check_branch
      %46 = sbr.rel (0) target = $region29
    $region28: #{tpu_custom_call.1} parent=1 // pred_region
      %47 = dma.done [#allocation7], 1024
    $region29: #{tpu_custom_call.1} parent=1 // pred_fallthru
      _
    %v48 = vld [vmem:[#allocation3] sm:$0xff]
    %v49 = vld [vmem:[#allocation6] sm:$0xff]
    %v50 = vld [vmem:[#allocation6 + $0x8] sm:$0xff]
    %v51 = vld [vmem:[#allocation6 + $0x10] sm:$0xff]
    %v52 = vld [vmem:[#allocation6 + $0x18] sm:$0xff]
    %v53 = vld [vmem:[#allocation6 + $0x20] sm:$0xff]
    %v54 = vld [vmem:[#allocation6 + $0x28] sm:$0xff]
    %v55 = vld [vmem:[#allocation6 + $0x30] sm:$0xff]
    %v56 = vld [vmem:[#allocation6 + $0x38] sm:$0xff]
    %v57 = vld [vmem:[%s2] sm:$0x3]
    %v59 = vlaneseq
    %v60 = vshrl.u32 %v59, 7
    %v61 = vsub.s32 0, %v60
    %v62 = vrot.slane %v57, %v61
    %v63 = vlaneseq
    %v64 = vshrl.u32 %v63, 7
    %v65 = vsub.s32 1, %v64
    %v66 = vrot.slane %v57, %v65
    %vm69 = vcmask 261120
    %v71 = vsel %vm69, %v48, 0
    %73 = vmatprep.subr.mxu0 %v50
    %74 = vmatpush1.msra.mxu0 %v49
    %75 = vmatprep.subr.mxu0 %v52
    %76 = vmatpush1.msra.mxu0 %v51
    %77 = vmatprep.subr.mxu0 %v54
    %78 = vmatpush1.msra.mxu0 %v53
    %79 = vmatprep.subr.mxu0 %v56
    %80 = vmatpush1.msra.mxu0 %v55
    %81 = vmatprep.subr.mxu0 0.0
    %82 = vmatpush1.msra.mxu0 0.0
    %83 = vmatprep.subr.mxu0 0.0
    %84 = vmatpush1.msra.mxu0 0.0
    %85 = vmatprep.subr.mxu0 0.0
    %86 = vmatpush1.msra.mxu0 0.0
    %87 = vmatprep.subr.mxu0 0.0
    %88 = vmatpush1.msra.mxu0 0.0
    %89 = vmatprep.subr.mxu0 0.0
    %90 = vmatpush1.msra.mxu0 0.0
    %91 = vmatprep.subr.mxu0 0.0
    %92 = vmatpush1.msra.mxu0 0.0
    %93 = vmatprep.subr.mxu0 0.0
    %94 = vmatpush1.msra.mxu0 0.0
    %95 = vmatprep.subr.mxu0 0.0
    %96 = vmatpush1.msra.mxu0 0.0
    %97 = vmatprep.subr.mxu0 0.0
    %98 = vmatpush1.msra.mxu0 0.0
    %99 = vmatprep.subr.mxu0 0.0
    %100 = vmatpush1.msra.mxu0 0.0
    %101 = vmatprep.subr.mxu0 0.0
    %102 = vmatpush1.msra.mxu0 0.0
    %103 = vmatprep.subr.mxu0 0.0
    %104 = vmatpush1.msra.mxu0 0.0
    %105 = vmatprep.subr.mxu0 0.0
    %106 = vmatpush1.msra.mxu0 0.0
    %107 = vmatprep.subr.mxu0 0.0
    %108 = vmatpush1.msra.mxu0 0.0
    %109 = vmatprep.subr.mxu0 0.0
    %110 = vmatpush1.msra.mxu0 0.0
    %111 = vmatprep.subr.mxu0 0.0
    %112 = vmatpush1.msra.mxu0 0.0
    %113 = vmatprep.subr.mxu0 0.0
    %114 = vmatpush1.msra.mxu0 0.0
    %115 = vmatprep.subr.mxu0 0.0
    %116 = vmatpush1.msra.mxu0 0.0
    %117 = vmatprep.subr.mxu0 0.0
    %118 = vmatpush1.msra.mxu0 0.0
    %119 = vmatprep.subr.mxu0 0.0
    %120 = vmatpush1.msra.mxu0 0.0
    %121 = vmatprep.subr.mxu0 0.0
    %122 = vmatpush1.msra.mxu0 0.0
    %123 = vmatprep.subr.mxu0 0.0
    %124 = vmatpush1.msra.mxu0 0.0
    %125 = vmatprep.subr.mxu0 0.0
    %126 = vmatpush1.msra.mxu0 0.0
    %127 = vmatprep.subr.mxu0 0.0
    %128 = vmatpush1.msra.mxu0 0.0
    %129 = vmatprep.subr.mxu0 0.0
    %130 = vmatpush1.msra.mxu0 0.0
    %131 = vmatprep.subr.mxu0 0.0
    %132 = vmatpush1.msra.mxu0 0.0
    %133 = vmatprep.subr.mxu0 0.0
    %134 = vmatpush1.msra.mxu0 0.0
    %135 = vmatprep.subr.mxu0 0.0
    %136 = vmatpush1.msra.mxu0 0.0
    %137 = vmatprep.mubr.f32.mxu0 0.0
    %138 = vmatmul.mubr.f32.gmra.mrb[0].mxu0 %v71
    %v139 = vpop.f32.mrb[0].mxu0
    %v140 = vadd.f32 %v62, %v139
    %v141 = vpop.f32.mrb[0].mxu0
    %v142 = vadd.f32 %v66, %v141
    %143 = vdwg.mxu0
    %v144 = vmax.f32 %v140, 0.0
    %v145 = vmax.f32 %v142, 0.0
    %v146 = vld [vmem:[%s3] sm:$0x3]
    %v148 = vlaneseq
    %v149 = vshrl.u32 %v148, 7
    %v150 = vsub.s32 0, %v149
    %v151 = vrot.slane %v146, %v150
    %v152 = vlaneseq
    %v153 = vshrl.u32 %v152, 7
    %v154 = vsub.s32 1, %v153
    %v155 = vrot.slane %v146, %v154
    %v158 = vmul.f32 %v144, %v151
    %v159 = vmul.f32 %v145, %v155
    %v160 = vadd.f32 %v158, %v159
    %161 = vadd.xlane.f32.xlu0 %v160
    %v162 = vpop.xlane.xlu0 %161
    %s163 = sld [smem:[#allocation2]]
    %v164 = vstv %s163
    %v165 = vadd.f32 %v162, %v164
    %v166 = vxor.u32 %v165, 2147483648
    %v167 = vmul.f32 %v166, 1.442695
    %v168 = vpow.pop %v167
    %v169 = vadd.f32 %v168, 1.0
    %v170 = vrcp.pop %v169
    %v171 = vmul.f32 1.0, %v170
    %v172 = vmul.f32 %v48, %v171
    %173 = vst.msk [vmem:[#allocation8] sm:$0xff] %vm69, %v172
    // Predicated region
    $region30: #{tpu_custom_call.1} parent=1 // pred_check
      _
    $region31: #{tpu_custom_call.1} parent=1 // pred_check_branch
      %175 = sbr.rel (0) target = $region33
    $region32: #{tpu_custom_call.1} parent=1 // pred_region
      %s177 = ssub.s32 128, 128
      %178 = vsyncadd [#allocation5], %s177
      %s180 = sshll.u32 [#allocation8], 4
      %s181 = int_to_ptr.vmem [resolvable:$true] %s180
      %183 = dma.vmem_to_hbm [thread:$0]  %s181, 128, %s5, [#allocation5]
    $region33: #{tpu_custom_call.1} parent=1 // pred_fallthru
      _
    // Predicated region
    $region34: #{tpu_custom_call.1} parent=1 // pred_check
      _
    $region35: #{tpu_custom_call.1} parent=1 // pred_check_branch
      %185 = sbr.rel (0) target = $region37
    $region36: #{tpu_custom_call.1} parent=1 // pred_region
      %186 = dma.done [#allocation5], 128
    $region37: #{tpu_custom_call.1} parent=1 // pred_fallthru
      _
    %187 = vsyncpa [#allocation4], 1
    %188 = vsyncpa [#allocation7], 1
    %189 = vsyncpa [#allocation5], 1

</llo_original>
